<compile_context>
chip_gen: v6e
topology: v6e:2x2x1
jax: 0.10.0
libtpu: 0.0.40
codegen_flags: <defaults>
</compile_context>

<pallas_src>
import numpy as np

import jax
import jax.numpy as jnp
from jax.experimental import pallas as pl
from jax.experimental.pallas import tpu as pltpu


def _largest_divisor_at_most(n: int, cap: int) -> int:
    cap = max(1, min(n, cap))
    for d in range(cap, 0, -1):
        if n % d == 0:
            return d
    return 1


def _choose_row_tile(nr: int, cap: int) -> int:
    """Time tile (in folded rows): must divide nr and satisfy the (8,128) rule
    on the second-minor block dim (multiple of 8, or the full dim)."""
    if nr <= cap:
        return nr
    for d in range(min(cap, nr), 0, -1):
        if nr % d == 0 and d % 8 == 0:
            return d
    return nr  # fall back to one full block


def make_causal_conv1d(kernel_size: int, dilation: int, max_rows_per_tile: int = 256):
    K = kernel_size
    D = dilation
    P = (K - 1) * D  # causal (left) padding in time steps

    def causal_conv1d(x, weight, bias):
        """x: (B, T, C_in); weight: (C_out, C_in, K) [PyTorch layout]; bias: (C_out,)."""
        B, T, C_in = x.shape
        C_out = weight.shape[0]

        # Fold factor G: pack G consecutive time steps into the lane dim so the
        # output slab is lane-dense (G*C_out >= 128 when T allows).  For
        # C_out >= 128 this degenerates to G == 1 (already lane-dense).
        G = _largest_divisor_at_most(T, max(1, 128 // max(1, C_out)))
        H = -(-P // G)            # folded history rows for the causal halo
        NR = T // G               # number of folded rows
        RT = _choose_row_tile(NR, max_rows_per_tile)
        GCIN, GCOUT = G * C_in, G * C_out

        # Free, layout-only reshape: time folded into lanes.
        x_f = x.reshape(B, NR, GCIN)

        # Block-Toeplitz folded weight.
        #   y[t] = sum_k w_kio[k] . x[t - (K-1-k)*D]    (x[<0] == 0)
        # In folded coords, output row r needs folded rows r-H .. r:
        #   y_f[r] = sum_h win[r-H+h] @ W_parts[h]
        # The placement is a trace-time constant -> one einsum, no .at[].set().
        sel = np.zeros((K, G, H + 1, G), dtype=np.float32)
        active_set = set()
        for k in range(K):
            delta = (K - 1 - k) * D
            for g in range(G):
                j = H * G + g - delta           # position inside the (H+1)*G window
                jb, jg = divmod(j, G)
                sel[k, g, jb, jg] = 1.0
                active_set.add(jb)
        active = sorted(active_set)             # window blocks carrying any tap
        n_act = len(active)

        w_kio = jnp.transpose(weight, (2, 1, 0)).astype(jnp.float32)   # (K, C_in, C_out)
        # (H+1, G, C_in, G, C_out) -> (H+1, GCIN, GCOUT)
        W_parts = jnp.einsum("kgbj,kio->bjigo", jnp.asarray(sel), w_kio)
        W_parts = W_parts.reshape(H + 1, GCIN, GCOUT).astype(x.dtype)
        W_act = W_parts[np.asarray(active)]                            # (n_act, GCIN, GCOUT)

        b_f = jnp.tile(bias.astype(jnp.float32), G).reshape(1, GCOUT)

        def kernel(x_ref, w_ref, b_ref, o_ref, *scratch_refs):
            # x_ref  : (1, RT, GCIN)         current folded time tile
            # w_ref  : (n_act, GCIN, GCOUT)  resident folded weights
            # b_ref  : (1, GCOUT) f32        resident folded bias
            # o_ref  : (1, RT, GCOUT)        lane-dense output tile
            # win_ref: (RT + H, GCIN)        H rows of causal history + current tile
            r = pl.program_id(1)
            x_tile = x_ref[0]

            if H == 0:
                acc = jnp.dot(x_tile, w_ref[0], preferred_element_type=jnp.float32)
            else:
                win_ref = scratch_refs[0]

                @pl.when(r == 0)
                def _zero_history():            # causal left padding: x[t < 0] == 0
                    win_ref[0:H, :] = jnp.zeros((H, GCIN), dtype=win_ref.dtype)

                win_ref[H:, :] = x_tile

                acc = None
                for i, h in enumerate(active):
                    # Un-shifted tap dots straight from the input tile (aligned);
                    # shifted taps read the history window.
                    lhs = x_tile if h == H else win_ref[h:h + RT, :]
                    term = jnp.dot(lhs, w_ref[i], preferred_element_type=jnp.float32)
                    acc = term if acc is None else acc + term

                # carry the last H folded rows into the next time tile
                win_ref[0:H, :] = win_ref[RT:RT + H, :]

            o_ref[0] = (acc + b_ref[...]).astype(o_ref.dtype)

        scratch_shapes = []
        if H > 0:
            scratch_shapes.append(pltpu.VMEM((RT + H, GCIN), x.dtype))

        y_f = pl.pallas_call(
            kernel,
            out_shape=jax.ShapeDtypeStruct((B, NR, GCOUT), x.dtype),
            grid_spec=pltpu.PrefetchScalarGridSpec(
                num_scalar_prefetch=0,
                grid=(B, NR // RT),                      # time tiles innermost
                in_specs=[
                    pl.BlockSpec((1, RT, GCIN), lambda b, r: (b, r, 0)),
                    pl.BlockSpec((n_act, GCIN, GCOUT), lambda b, r: (0, 0, 0)),
                    pl.BlockSpec((1, GCOUT), lambda b, r: (0, 0)),
                ],
                out_specs=pl.BlockSpec((1, RT, GCOUT), lambda b, r: (b, r, 0)),
                scratch_shapes=scratch_shapes,
            ),
            compiler_params=pltpu.CompilerParams(
                # B parallel (megacore); time tiles sequential (causal carry).
                dimension_semantics=("parallel", "arbitrary")),
        )(x_f, W_act, b_f)

        return y_f.reshape(B, T, C_out)

    return causal_conv1d


def reference_causal_conv1d(x, weight, bias, dilation):
    """Pure-JAX reference matching the PyTorch module forward."""
    K = weight.shape[-1]
    P = (K - 1) * dilation
    x_ncl = jnp.transpose(x, (0, 2, 1))  # (B, C_in, T)
    y = jax.lax.conv_general_dilated(
        x_ncl, weight,
        window_strides=(1,),
        padding=[(P, P)],
        rhs_dilation=(dilation,),
        dimension_numbers=("NCH", "OIH", "NCH"),
    )
    y = y + bias[None, :, None]
    y = jnp.transpose(y, (0, 2, 1))      # (B, T+P, C_out)
    return y[:, :-P, :] if P != 0 else y


if __name__ == "__main__":
    # Module config: Conv1d only (batch_norm/activation/dropout/projection off).
    in_channels, out_channels, kernel_size, dilation = 4, 8, 3, 1
    B, T = 2, 16

    key = jax.random.PRNGKey(0)
    kx, kw, kb = jax.random.split(key, 3)

    x = jax.random.normal(kx, (B, T, in_channels), dtype=jnp.float32)
    fan_in = in_channels * kernel_size
    bound = 1.0 / (fan_in ** 0.5)
    weight = jax.random.uniform(kw, (out_channels, in_channels, kernel_size),
                                minval=-bound, maxval=bound, dtype=jnp.float32)
    bias = jax.random.uniform(kb, (out_channels,),
                              minval=-bound, maxval=bound, dtype=jnp.float32)

    conv = jax.jit(make_causal_conv1d(kernel_size, dilation))
    out = jax.block_until_ready(conv(x, weight, bias))
    ref = reference_causal_conv1d(x, weight, bias, dilation)
    assert out.shape == (B, T, out_channels)
    assert jnp.allclose(out, ref, atol=1e-4, rtol=1e-4), "mismatch vs reference"

    # Second config: exercises time tiling, the causal carry across time tiles,
    # and dilation > 1 (grid = (2, 2), RT = 8 folded rows).
    B2, T2, dil2 = 2, 256, 2
    x2 = jax.random.normal(kx, (B2, T2, in_channels), dtype=jnp.float32)
    conv2 = jax.jit(make_causal_conv1d(kernel_size, dil2, max_rows_per_tile=8))
    out2 = jax.block_until_ready(conv2(x2, weight, bias))
    ref2 = reference_causal_conv1d(x2, weight, bias, dil2)
    assert out2.shape == (B2, T2, out_channels)
    assert jnp.allclose(out2, ref2, atol=1e-4, rtol=1e-4), "mismatch vs reference (tiled)"

    print("KERNEL_OK")
</pallas_src>

<mosaic_0001>
module attributes {stable_mosaic.version = 11 : i64} {
  func.func @kernel(%arg0: i32, %arg1: i32, %arg2: memref<1x1x64xf32, #tpu.memory_space<vmem>>, %arg3: memref<2x64x128xf32, #tpu.memory_space<vmem>>, %arg4: memref<1x128xf32, #tpu.memory_space<vmem>>, %arg5: memref<1x1x128xf32, #tpu.memory_space<vmem>>, %arg6: memref<2x64xf32, #tpu.memory_space<vmem>>) attributes {dimension_semantics = [#tpu.dimension_semantics<parallel>, #tpu.dimension_semantics<arbitrary>], iteration_bounds = array<i64: 2, 1>, scalar_prefetch = 0 : i64, scratch_operands = 1 : i64, tpu.core_type = #tpu.core_type<tc>, window_params = [{transform_indices = @transform_0, window_bounds = array<i64: 1, 1, 64>}, {pipeline_mode = #tpu.pipeline_mode<synchronous>, transform_indices = @transform_1, window_bounds = array<i64: 2, 64, 128>}, {pipeline_mode = #tpu.pipeline_mode<synchronous>, transform_indices = @transform_2, window_bounds = array<i64: 1, 128>}, {transform_indices = @transform_3, window_bounds = array<i64: 1, 1, 128>}]} {
    %c0 = arith.constant 0 : index
    %c0_0 = arith.constant 0 : index
    %c0_1 = arith.constant 0 : index
    %0 = vector.load %arg2[%c0, %c0_0, %c0_1] : memref<1x1x64xf32, #tpu.memory_space<vmem>>, vector<1x1x64xf32>
    %1 = vector.shape_cast %0 : vector<1x1x64xf32> to vector<1x64xf32>
    %c0_i32 = arith.constant 0 : i32
    %2 = arith.cmpi eq, %arg1, %c0_i32 : i32
    %3 = arith.extui %2 : i1 to i32
    %c0_i32_2 = arith.constant 0 : i32
    %4 = arith.cmpi ne, %3, %c0_i32_2 : i32
    scf.if %4 {
      %cst_22 = arith.constant 0.000000e+00 : f32
      %21 = vector.broadcast %cst_22 : f32 to vector<1x64xf32>
      %c0_23 = arith.constant 0 : index
      %c0_24 = arith.constant 0 : index
      %22 = vector.load %arg6[%c0_23, %c0_24] : memref<2x64xf32, #tpu.memory_space<vmem>>, vector<1x64xf32>
      tpu.vector_store %arg6[%c0_23, %c0_24], %21 {strides = array<i32>} : memref<2x64xf32, #tpu.memory_space<vmem>>, vector<1x64xf32>,
    } else {
    }
    %c1 = arith.constant 1 : index
    %c0_3 = arith.constant 0 : index
    %5 = vector.load %arg6[%c1, %c0_3] : memref<2x64xf32, #tpu.memory_space<vmem>>, vector<1x64xf32>
    tpu.vector_store %arg6[%c1, %c0_3], %1 {strides = array<i32>} : memref<2x64xf32, #tpu.memory_space<vmem>>, vector<1x64xf32>,
    %c0_4 = arith.constant 0 : index
    %c0_5 = arith.constant 0 : index
    %6 = vector.load %arg6[%c0_4, %c0_5] : memref<2x64xf32, #tpu.memory_space<vmem>>, vector<1x64xf32>
    %c0_6 = arith.constant 0 : index
    %c0_7 = arith.constant 0 : index
    %c0_8 = arith.constant 0 : index
    %7 = vector.load %arg3[%c0_6, %c0_7, %c0_8] : memref<2x64x128xf32, #tpu.memory_space<vmem>>, vector<1x64x128xf32>
    %8 = vector.shape_cast %7 : vector<1x64x128xf32> to vector<64x128xf32>
    %cst = arith.constant dense<0.000000e+00> : vector<1x128xf32>
    %9 = tpu.matmul %6, %8, %cst {dimension_numbers = #tpu.dot_dimension_numbers<[1], [0], [0], [1], [0, 0, 1, 1], [], []>} : vector<1x64xf32>, vector<64x128xf32>, vector<1x128xf32> -> vector<1x128xf32>
    %c1_9 = arith.constant 1 : index
    %c0_10 = arith.constant 0 : index
    %c0_11 = arith.constant 0 : index
    %10 = vector.load %arg3[%c1_9, %c0_10, %c0_11] : memref<2x64x128xf32, #tpu.memory_space<vmem>>, vector<1x64x128xf32>
    %11 = vector.shape_cast %10 : vector<1x64x128xf32> to vector<64x128xf32>
    %cst_12 = arith.constant dense<0.000000e+00> : vector<1x128xf32>
    %12 = tpu.matmul %1, %11, %cst_12 {dimension_numbers = #tpu.dot_dimension_numbers<[1], [0], [0], [1], [0, 0, 1, 1], [], []>} : vector<1x64xf32>, vector<64x128xf32>, vector<1x128xf32> -> vector<1x128xf32>
    %13 = arith.addf %9, %12 : vector<1x128xf32>
    %c1_13 = arith.constant 1 : index
    %c0_14 = arith.constant 0 : index
    %14 = vector.load %arg6[%c1_13, %c0_14] : memref<2x64xf32, #tpu.memory_space<vmem>>, vector<1x64xf32>
    %c0_15 = arith.constant 0 : index
    %c0_16 = arith.constant 0 : index
    %15 = vector.load %arg6[%c0_15, %c0_16] : memref<2x64xf32, #tpu.memory_space<vmem>>, vector<1x64xf32>
    tpu.vector_store %arg6[%c0_15, %c0_16], %14 {strides = array<i32>} : memref<2x64xf32, #tpu.memory_space<vmem>>, vector<1x64xf32>,
    %c0_17 = arith.constant 0 : index
    %c0_18 = arith.constant 0 : index
    %16 = vector.load %arg4[%c0_17, %c0_18] : memref<1x128xf32, #tpu.memory_space<vmem>>, vector<1x128xf32>
    %17 = arith.addf %13, %16 : vector<1x128xf32>
    %c0_19 = arith.constant 0 : index
    %c0_20 = arith.constant 0 : index
    %c0_21 = arith.constant 0 : index
    %18 = vector.load %arg5[%c0_19, %c0_20, %c0_21] : memref<1x1x128xf32, #tpu.memory_space<vmem>>, vector<1x1x128xf32>
    %19 = vector.shape_cast %18 : vector<1x1x128xf32> to vector<1x128xf32>
    %20 = vector.shape_cast %17 : vector<1x128xf32> to vector<1x1x128xf32>
    tpu.vector_store %arg5[%c0_19, %c0_20, %c0_21], %20 {strides = array<i32>} : memref<1x1x128xf32, #tpu.memory_space<vmem>>, vector<1x1x128xf32>,
    return
  }
  func.func @transform_0(%arg0: i32, %arg1: i32) -> (i32, i32, i32) {
    %c0_i32 = arith.constant 0 : i32
    %c0_i32_0 = arith.constant 0 : i32
    return %arg0, %arg1, %c0_i32 : i32, i32, i32
  }
  func.func @transform_1(%arg0: i32, %arg1: i32) -> (i32, i32, i32) {
    %c0_i32 = arith.constant 0 : i32
    %c0_i32_0 = arith.constant 0 : i32
    %c0_i32_1 = arith.constant 0 : i32
    %c0_i32_2 = arith.constant 0 : i32
    return %c0_i32, %c0_i32_0, %c0_i32_1 : i32, i32, i32
  }
  func.func @transform_2(%arg0: i32, %arg1: i32) -> (i32, i32) {
    %c0_i32 = arith.constant 0 : i32
    %c0_i32_0 = arith.constant 0 : i32
    %c0_i32_1 = arith.constant 0 : i32
    return %c0_i32, %c0_i32_0 : i32, i32
  }
  func.func @transform_3(%arg0: i32, %arg1: i32) -> (i32, i32, i32) {
    %c0_i32 = arith.constant 0 : i32
    %c0_i32_0 = arith.constant 0 : i32
    return %arg0, %arg1, %c0_i32 : i32, i32, i32
  }
}

</mosaic_0001>

<llo_original>
// kernel: tile.8
$region0: #{tile.8}
  #allocation0 [shape = 's32[1]{0}', space=sflag, size = 0x4, scoped, tag = 'scoped memory for tile.8']
  %s0 = inlined_call_operand.vmem [shape: f32[8], index: 0, kind: input, shape index: {}]
  %s1 = inlined_call_operand.vmem [shape: f32[16,8], index: 1, kind: output, shape index: {}]
  // Predicated region
  $region2: #{tile.8} parent=0 // pred_check
    _
  $region3: #{tile.8} parent=0 // pred_check_branch
    %3 = sbr.rel (0) target = $region5
  $region4: #{tile.8} parent=0 // pred_region
    _
  $region5: #{tile.8} parent=0 // pred_fallthru
    _
  %v4 = vld [vmem:[%s0] ss:$0 sm:$0xff]
  %5 = vst [vmem:[%s1] sm:$0xff] %v4
  %s6 = scalar_lea.vmem %s1, 8
  %7 = vst [vmem:[%s6] sm:$0xff] %v4

// kernel: tile.9
$region0: #{tile.9}
  %s0 = inlined_call_operand.vmem [shape: f32[16,8], index: 0, kind: input, shape index: {}]
  %s1 = inlined_call_operand.vmem [shape: f32[1,128], index: 1, kind: output, shape index: {}]
  $region1: #{tile.9} parent=0
    #allocation0 [shape = 'u8[4096]{0}', space=vmem, size = 0x1000, scoped, tag = 'scoped mem for output reshape']
    %v2 = vld [vmem:[%s0] sm:$0x1]
    %vm3 = vcmask 64512
    %4 = vst.msk [vmem:[#allocation0] sm:$0x1] %vm3, %v2
    %s5 = scalar_lea.vmem %s0, 15
    %v6 = vld [vmem:[%s5] sm:$0x1]
    %7 = vrot.lane.b32.xlu0 %v6, 120
    %v8 = vpop.permute.xlu0 %7
    %vm9 = vcmask 1048512
    %10 = vst.msk [vmem:[#allocation0] sm:$0x1] %vm9, %v8
    %s11 = scalar_lea.vmem %s0, 14
    %v12 = vld [vmem:[%s11] sm:$0x1]
    %13 = vrot.lane.b32.xlu0 %v12, 112
    %v14 = vpop.permute.xlu0 %13
    %vm15 = vcmask 982912
    %16 = vst.msk [vmem:[#allocation0] sm:$0x1] %vm15, %v14
    %s17 = scalar_lea.vmem %s0, 13
    %v18 = vld [vmem:[%s17] sm:$0x1]
    %19 = vrot.lane.b32.xlu0 %v18, 104
    %v20 = vpop.permute.xlu0 %19
    %vm21 = vcmask 917312
    %22 = vst.msk [vmem:[#allocation0] sm:$0x1] %vm21, %v20
    %s23 = scalar_lea.vmem %s0, 12
    %v24 = vld [vmem:[%s23] sm:$0x1]
    %25 = vrot.lane.b32.xlu0 %v24, 96
    %v26 = vpop.permute.xlu0 %25
    %vm27 = vcmask 851712
    %28 = vst.msk [vmem:[#allocation0] sm:$0x1] %vm27, %v26
    %s29 = scalar_lea.vmem %s0, 11
    %v30 = vld [vmem:[%s29] sm:$0x1]
    %31 = vrot.lane.b32.xlu0 %v30, 88
    %v32 = vpop.permute.xlu0 %31
    %vm33 = vcmask 786112
    %34 = vst.msk [vmem:[#allocation0] sm:$0x1] %vm33, %v32
    %s35 = scalar_lea.vmem %s0, 10
    %v36 = vld [vmem:[%s35] sm:$0x1]
    %37 = vrot.lane.b32.xlu0 %v36, 80
    %v38 = vpop.permute.xlu0 %37
    %vm39 = vcmask 720512
    %40 = vst.msk [vmem:[#allocation0] sm:$0x1] %vm39, %v38
    %s41 = scalar_lea.vmem %s0, 9
    %v42 = vld [vmem:[%s41] sm:$0x1]
    %43 = vrot.lane.b32.xlu0 %v42, 72
    %v44 = vpop.permute.xlu0 %43
    %vm45 = vcmask 654912
    %46 = vst.msk [vmem:[#allocation0] sm:$0x1] %vm45, %v44
    %s47 = scalar_lea.vmem %s0, 8
    %v48 = vld [vmem:[%s47] sm:$0x1]
    %49 = vrot.lane.b32.xlu0 %v48, 64
    %v50 = vpop.permute.xlu0 %49
    %vm51 = vcmask 589312
    %52 = vst.msk [vmem:[#allocation0] sm:$0x1] %vm51, %v50
    %s53 = scalar_lea.vmem %s0, 7
    %v54 = vld [vmem:[%s53] sm:$0x1]
    %55 = vrot.lane.b32.xlu0 %v54, 56
    %v56 = vpop.permute.xlu0 %55
    %vm57 = vcmask 523712
    %58 = vst.msk [vmem:[#allocation0] sm:$0x1] %vm57, %v56
    %s59 = scalar_lea.vmem %s0, 6
    %v60 = vld [vmem:[%s59] sm:$0x1]
    %61 = vrot.lane.b32.xlu0 %v60, 48
    %v62 = vpop.permute.xlu0 %61
    %vm63 = vcmask 458112
    %64 = vst.msk [vmem:[#allocation0] sm:$0x1] %vm63, %v62
    %s65 = scalar_lea.vmem %s0, 5
    %v66 = vld [vmem:[%s65] sm:$0x1]
    %67 = vrot.lane.b32.xlu0 %v66, 40
    %v68 = vpop.permute.xlu0 %67
    %vm69 = vcmask 392512
    %70 = vst.msk [vmem:[#allocation0] sm:$0x1] %vm69, %v68
    %s71 = scalar_lea.vmem %s0, 4
    %v72 = vld [vmem:[%s71] sm:$0x1]
    %73 = vrot.lane.b32.xlu0 %v72, 32
    %v74 = vpop.permute.xlu0 %73
    %vm75 = vcmask 326912
    %76 = vst.msk [vmem:[#allocation0] sm:$0x1] %vm75, %v74
    %s77 = scalar_lea.vmem %s0, 3
    %v78 = vld [vmem:[%s77] sm:$0x1]
    %79 = vrot.lane.b32.xlu0 %v78, 24
    %v80 = vpop.permute.xlu0 %79
    %vm81 = vcmask 261312
    %82 = vst.msk [vmem:[#allocation0] sm:$0x1] %vm81, %v80
    %s83 = scalar_lea.vmem %s0, 2
    %v84 = vld [vmem:[%s83] sm:$0x1]
    %85 = vrot.lane.b32.xlu0 %v84, 16
    %v86 = vpop.permute.xlu0 %85
    %vm87 = vcmask 195712
    %88 = vst.msk [vmem:[#allocation0] sm:$0x1] %vm87, %v86
    %s89 = scalar_lea.vmem %s0, 1
    %v90 = vld [vmem:[%s89] sm:$0x1]
    %91 = vrot.lane.b32.xlu0 %v90, 8
    %v92 = vpop.permute.xlu0 %91
    %vm93 = vcmask 130112
    %94 = vst.msk [vmem:[#allocation0] sm:$0x1] %vm93, %v92
    %s96 = sshll.u32 1, 1
    %s97 = ssub.s32 %s96, 1
    %v99 = vld [vmem:[#allocation0] sm:%s97]
    %s100 = sshll.u32 1, 1
    %s101 = ssub.s32 %s100, 1
    %102 = vst [vmem:[%s1] sm:%s101] %v99

// kernel: causal_conv1d.1
$region0: #{causal_conv1d.1}
  #allocation0 [shape = 'u32[]', space=smem, size = 0x4, offset = 0x4, fixed_abs, tag = 'smem constant byte address 0x4 - core index']
  #allocation1 [shape = 'u32[144,128]{1,0:T(1,128)}', space=vmem, size = 0x12000, scoped, tag = 'internal scratch']
  #allocation2 [shape = 'f32[2,64]{1,0:T(2,128)}', space=vmem, size = 0x400, scoped, tag = 'scratch operand']
  %s0 = inlined_call_operand.vmem [shape: f32[2,1,64], index: 0, kind: input, shape index: {}]
  %s1 = inlined_call_operand.vmem [shape: f32[2,64,128], index: 1, kind: input, shape index: {}]
  %s2 = inlined_call_operand.vmem [shape: f32[1,128], index: 2, kind: input, shape index: {}]
  %s3 = inlined_call_operand.vmem [shape: f32[2,1,128], index: 3, kind: output, shape index: {}]
  %s4 = sld [smem:[#allocation0]]
  $region49: #{causal_conv1d.1} parent=0
    _
  %s6 = ssub.s32 1, %s4
  %s7 = scalar_select 0, %s6, %s4
  loop: start=0, step=1, limit=4
  $region2: #{causal_conv1d.1} parent=0 // loop_pre_header
    _
  $region3: #{causal_conv1d.1} parent=0 // loop_header
    %s9 = sphi 0, %s13
    %p10 = scmp.ge.s32.totalorder %s9, 4
    %s16 = sphi 0, %s28
    %s17 = sphi 0, %s24
    %s18 = sphi 0, %s16
    %s19 = sphi 0, %s17
    %s20 = sphi 0, %s18
    %s21 = sphi 0, %s19
    %s33 = sphi 0, %s35
    %s36 = sphi 0, %s33
    %s37 = sphi 0, %s36
    %s53 = sphi 0, %s37
    %s57 = sphi 0, %s57
    %s59 = sphi 0, %s57
    %s60 = sphi 0, %s59
    %s74 = sphi 0, %s60
    %s78 = sphi 0, %s78
    %s80 = sphi 0, %s78
    %s81 = sphi 0, %s80
    %s95 = sphi 0, %s81
    %s103 = sphi 0, %s105
    %s106 = sphi 0, %s103
    %s107 = sphi 0, %s106
    %s123 = sphi 0, %s107
  $region4: #{causal_conv1d.1} parent=0 // loop_header_branch
    %12 = sbr.rel (%p10) target = $region8
  $region5: #{causal_conv1d.1} parent=0 // loop_body
    %s14 = ssub.s32 %s9, 1
    %s15 = ssub.s32 %s9, 2
    %s22 = sadd.s32 1, %s17
    %p23 = scmp.ge.s32.totalorder %s22, 1
    %s24 = scalar_select %p23, 0, %s22
    %s25 = sadd.s32 1, %s16
    %s26 = scalar_select %p23, %s25, %s16
    %p27 = scmp.ge.s32.totalorder %s26, 2
    %s28 = scalar_select %p27, 0, %s26
    %s29 = ssub.s32 %s16, %s28
    %s30 = ssub.s32 %s17, %s24
    %s31 = sor.u32 %s29, %s30
    %p32 = scmp.eq.s32.totalorder %s31, 0
    %s34 = sadd.s32 %s33, 1
    %s35 = scalar_select %p32, %s33, %s34
    %p38 = pneg %p32
    %p39 = scmp.eq.s32.totalorder %s9, 1
    %p40 = por %p38, %p39
    %p41 = scmp.ne.s32.totalorder %s33, %s36
    %p42 = scmp.eq.s32.totalorder %s9, 0
    %p43 = por %p41, %p42
    %p44 = scmp.ne.s32.totalorder %s33, %s36
    %p45 = scmp.eq.s32.totalorder %s14, 1
    %p46 = por %p44, %p45
    %p47 = scmp.ne.s32.totalorder %s36, %s37
    %p48 = scmp.eq.s32.totalorder %s14, 0
    %p49 = por %p47, %p48
    %p50 = scmp.ne.s32.totalorder %s36, %s37
    %p51 = scmp.eq.s32.totalorder %s15, 1
    %p52 = por %p50, %p51
    %p54 = scmp.ne.s32.totalorder %s37, %s53
    %p55 = scmp.eq.s32.totalorder %s15, 0
    %p56 = por %p54, %p55
    %s58 = sadd.s32 %s57, 1
    %p61 = scmp.eq.s32.totalorder %s9, 1
    %p62 = scmp.ne.s32.totalorder %s57, %s59
    %p63 = scmp.eq.s32.totalorder %s9, 0
    %p64 = por %p62, %p63
    %p65 = scmp.ne.s32.totalorder %s57, %s59
    %p66 = scmp.eq.s32.totalorder %s14, 1
    %p67 = por %p65, %p66
    %p68 = scmp.ne.s32.totalorder %s59, %s60
    %p69 = scmp.eq.s32.totalorder %s14, 0
    %p70 = por %p68, %p69
    %p71 = scmp.ne.s32.totalorder %s59, %s60
    %p72 = scmp.eq.s32.totalorder %s15, 1
    %p73 = por %p71, %p72
    %p75 = scmp.ne.s32.totalorder %s60, %s74
    %p76 = scmp.eq.s32.totalorder %s15, 0
    %p77 = por %p75, %p76
    %s79 = sadd.s32 %s78, 1
    %p82 = scmp.eq.s32.totalorder %s9, 1
    %p83 = scmp.ne.s32.totalorder %s78, %s80
    %p84 = scmp.eq.s32.totalorder %s9, 0
    %p85 = por %p83, %p84
    %p86 = scmp.ne.s32.totalorder %s78, %s80
    %p87 = scmp.eq.s32.totalorder %s14, 1
    %p88 = por %p86, %p87
    %p89 = scmp.ne.s32.totalorder %s80, %s81
    %p90 = scmp.eq.s32.totalorder %s14, 0
    %p91 = por %p89, %p90
    %p92 = scmp.ne.s32.totalorder %s80, %s81
    %p93 = scmp.eq.s32.totalorder %s15, 1
    %p94 = por %p92, %p93
    %p96 = scmp.ne.s32.totalorder %s81, %s95
    %p97 = scmp.eq.s32.totalorder %s15, 0
    %p98 = por %p96, %p97
    %s99 = ssub.s32 %s16, %s28
    %s100 = ssub.s32 %s17, %s24
    %s101 = sor.u32 %s99, %s100
    %p102 = scmp.eq.s32.totalorder %s101, 0
    %s104 = sadd.s32 %s103, 1
    %s105 = scalar_select %p102, %s103, %s104
    %p108 = pneg %p102
    %p109 = scmp.eq.s32.totalorder %s9, 1
    %p110 = por %p108, %p109
    %p111 = scmp.ne.s32.totalorder %s103, %s106
    %p112 = scmp.eq.s32.totalorder %s9, 0
    %p113 = por %p111, %p112
    %p114 = scmp.ne.s32.totalorder %s103, %s106
    %p115 = scmp.eq.s32.totalorder %s14, 1
    %p116 = por %p114, %p115
    %p117 = scmp.ne.s32.totalorder %s106, %s107
    %p118 = scmp.eq.s32.totalorder %s14, 0
    %p119 = por %p117, %p118
    %p120 = scmp.ne.s32.totalorder %s106, %s107
    %p121 = scmp.eq.s32.totalorder %s15, 1
    %p122 = por %p120, %p121
    %p124 = scmp.ne.s32.totalorder %s107, %s123
    %p125 = scmp.eq.s32.totalorder %s15, 0
    %p126 = por %p124, %p125
    %p127 = scmp.le.s32.totalorder 1, %s9
    %p128 = scmp.lt.s32.totalorder %s9, 3
    %p129 = pnand %p127, %p128
    %p130 = pneg %p129
    // Predicated region
    $region9: #{causal_conv1d.1} parent=5 // pred_check
      _
    $region10: #{causal_conv1d.1} parent=5 // pred_check_branch
      %132 = sbr.rel (%p129) target = $region12
    $region11: #{causal_conv1d.1} parent=5 // pred_region
      %s133 = ssub.s32 %s9, 1
      // Predicated region
      $region13: #{causal_conv1d.1} parent=11 // pred_check
        %p134 = pneg %p70
      $region14: #{causal_conv1d.1} parent=11 // pred_check_branch
        %136 = sbr.rel (%p134) target = $region16
      $region15: #{causal_conv1d.1} parent=11 // pred_region
        _
      $region16: #{causal_conv1d.1} parent=11 // pred_fallthru
        _
      // Predicated region
      $region17: #{causal_conv1d.1} parent=11 // pred_check
        %p137 = pneg %p91
      $region18: #{causal_conv1d.1} parent=11 // pred_check_branch
        %139 = sbr.rel (%p137) target = $region20
      $region19: #{causal_conv1d.1} parent=11 // pred_region
        _
      $region20: #{causal_conv1d.1} parent=11 // pred_fallthru
        _
    $region12: #{causal_conv1d.1} parent=5 // pred_fallthru
      _
    %p140 = scmp.lt.s32.totalorder %s9, 2
    // Predicated region
    $region21: #{causal_conv1d.1} parent=5 // pred_check
      %p141 = pneg %p140
    $region22: #{causal_conv1d.1} parent=5 // pred_check_branch
      %143 = sbr.rel (%p141) target = $region24
    $region23: #{causal_conv1d.1} parent=5 // pred_region
      // Predicated region
      $region25: #{causal_conv1d.1} parent=23 // pred_check
        %p144 = pneg %p43
      $region26: #{causal_conv1d.1} parent=23 // pred_check_branch
        %146 = sbr.rel (%p144) target = $region28
      $region27: #{causal_conv1d.1} parent=23 // pred_region
        %p147 = scmp.lt.s32.totalorder %s16, 1
        %s148 = scalar_select %p147, %s16, 1
        %p149 = scmp.lt.s32.totalorder %s17, 0
        %s150 = scalar_select %p149, %s17, 0
        %s151 = sadd.s32 %s150, %s148
        %s152 = scalar_lea.vmem %s0, %s151
      $region28: #{causal_conv1d.1} parent=23 // pred_fallthru
        _
    $region24: #{causal_conv1d.1} parent=5 // pred_fallthru
      _
    %p153 = scmp.le.s32.totalorder 1, %s9
    %p154 = scmp.lt.s32.totalorder %s9, 3
    %p155 = pnand %p153, %p154
    %p156 = pneg %p155
    // Predicated region
    $region29: #{causal_conv1d.1} parent=5 // pred_check
      _
    $region30: #{causal_conv1d.1} parent=5 // pred_check_branch
      %158 = sbr.rel (%p155) target = $region32
    $region31: #{causal_conv1d.1} parent=5 // pred_region
      %s159 = ssub.s32 %s9, 1
      %p160 = scmp.lt.s32.totalorder %s18, 1
      %s161 = scalar_select %p160, %s18, 1
      %p162 = scmp.lt.s32.totalorder %s19, 0
      %s163 = scalar_select %p162, %s19, 0
      %s164 = sadd.s32 %s163, %s161
      %s165 = scalar_lea.vmem %s0, %s164
      %p166 = pneg %p49
      %p167 = pneg %p46
      %p168 = pneg %p70
      %p169 = pneg %p67
      %p170 = pneg %p91
      %p171 = pneg %p88
      %p172 = pneg %p119
      %p173 = pneg %p116
      %p174 = scmp.lt.s32.totalorder %s18, 1
      %s175 = scalar_select %p174, %s18, 1
      %p176 = scmp.lt.s32.totalorder %s19, 0
      %s177 = scalar_select %p176, %s19, 0
      %s178 = sadd.s32 %s177, %s175
      %s179 = scalar_lea.vmem %s3, %s178
      %p180 = scmp.lt.s32.totalorder %s18, 1
      %s181 = scalar_select %p180, %s18, 1
      %p182 = scmp.lt.s32.totalorder %s19, 0
      %s183 = scalar_select %p182, %s19, 0
      %s184 = sadd.s32 %s183, %s181
      %s185 = scalar_lea.vmem %s0, %s184
      %p186 = scmp.lt.s32.totalorder %s18, 1
      %s187 = scalar_select %p186, %s18, 1
      %p188 = scmp.lt.s32.totalorder %s19, 0
      %s189 = scalar_select %p188, %s19, 0
      %s190 = sadd.s32 %s189, %s187
      %s191 = scalar_lea.vmem %s3, %s190
      %v192 = vld [vmem:[%s185] sm:$0x1]
      %p193 = scmp.eq.s32.totalorder %s19, 0
      // Predicated region
      $region33: #{causal_conv1d.1} parent=31 // pred_check
        %p194 = pneg %p193
      $region34: #{causal_conv1d.1} parent=31 // pred_check_branch
        %196 = sbr.rel (%p194) target = $region36
      $region35: #{causal_conv1d.1} parent=31 // pred_region
        %vm197 = vcmask 516096
        %198 = vst.msk [vmem:[#allocation2] sm:$0x1] %vm197, 0.0
      $region36: #{causal_conv1d.1} parent=31 // pred_fallthru
        _
      %vm199 = vcmask 516096
      %200 = vst.msk [vmem:[#allocation2 + $0x1] sm:$0x1] %vm199, %v192
      %v201 = vld [vmem:[#allocation2] sm:$0x1]
      %v202 = vld [vmem:[%s1] sm:$0xff]
      %v203 = vld [vmem:[%s1 + $0x8] sm:$0xff]
      %v204 = vld [vmem:[%s1 + $0x10] sm:$0xff]
      %v205 = vld [vmem:[%s1 + $0x18] sm:$0xff]
      %v206 = vld [vmem:[%s1 + $0x20] sm:$0xff]
      %v207 = vld [vmem:[%s1 + $0x28] sm:$0xff]
      %v208 = vld [vmem:[%s1 + $0x30] sm:$0xff]
      %v209 = vld [vmem:[%s1 + $0x38] sm:$0xff]
      %s210 = scalar_lea.vmem %s1, 64
      %v211 = vld [vmem:[%s210] sm:$0xff]
      %v212 = vld [vmem:[%s210 + $0x8] sm:$0xff]
      %v213 = vld [vmem:[%s210 + $0x10] sm:$0xff]
      %v214 = vld [vmem:[%s210 + $0x18] sm:$0xff]
      %v215 = vld [vmem:[%s210 + $0x20] sm:$0xff]
      %v216 = vld [vmem:[%s210 + $0x28] sm:$0xff]
      %v217 = vld [vmem:[%s210 + $0x30] sm:$0xff]
      %v218 = vld [vmem:[%s210 + $0x38] sm:$0xff]
      %vm219 = vcmask 523264
      %v221 = vsel %vm219, %v192, 0
      %223 = vmatprep.subr.mxu0 0.0
      %224 = vmatpush1.msra.mxu0 0.0
      %225 = vmatprep.subr.mxu0 0.0
      %226 = vmatpush1.msra.mxu0 0.0
      %227 = vmatprep.subr.mxu0 0.0
      %228 = vmatpush1.msra.mxu0 0.0
      %229 = vmatprep.subr.mxu0 0.0
      %230 = vmatpush1.msra.mxu0 0.0
      %231 = vmatprep.subr.mxu0 0.0
      %232 = vmatpush1.msra.mxu0 0.0
      %233 = vmatprep.subr.mxu0 0.0
      %234 = vmatpush1.msra.mxu0 0.0
      %235 = vmatprep.subr.mxu0 0.0
      %236 = vmatpush1.msra.mxu0 0.0
      %237 = vmatprep.subr.mxu0 0.0
      %238 = vmatpush1.msra.mxu0 0.0
      %239 = vmatprep.subr.mxu0 0.0
      %240 = vmatpush1.msra.mxu0 %v218
      %241 = vmatprep.subr.mxu0 0.0
      %242 = vmatpush1.msra.mxu0 %v217
      %243 = vmatprep.subr.mxu0 0.0
      %244 = vmatpush1.msra.mxu0 %v216
      %245 = vmatprep.subr.mxu0 0.0
      %246 = vmatpush1.msra.mxu0 %v215
      %247 = vmatprep.subr.mxu0 0.0
      %248 = vmatpush1.msra.mxu0 %v214
      %249 = vmatprep.subr.mxu0 0.0
      %250 = vmatpush1.msra.mxu0 %v213
      %251 = vmatprep.subr.mxu0 0.0
      %252 = vmatpush1.msra.mxu0 %v212
      %253 = vmatprep.subr.mxu0 0.0
      %254 = vmatpush1.msra.mxu0 %v211
      %255 = vmatprep.subr.mxu0 0.0
      %256 = vmatpush2.msra.mxu0 0.0
      %257 = vmatprep.subr.mxu0 0.0
      %258 = vmatpush2.msra.mxu0 0.0
      %259 = vmatprep.subr.mxu0 0.0
      %260 = vmatpush2.msra.mxu0 0.0
      %261 = vmatprep.subr.mxu0 0.0
      %262 = vmatpush2.msra.mxu0 0.0
      %263 = vmatprep.subr.mxu0 0.0
      %264 = vmatpush2.msra.mxu0 0.0
      %265 = vmatprep.subr.mxu0 0.0
      %266 = vmatpush2.msra.mxu0 0.0
      %267 = vmatprep.subr.mxu0 0.0
      %268 = vmatpush2.msra.mxu0 0.0
      %269 = vmatprep.subr.mxu0 0.0
      %270 = vmatpush2.msra.mxu0 0.0
      %271 = vmatprep.subr.mxu0 0.0
      %272 = vmatpush2.msra.mxu0 0.0
      %273 = vmatprep.subr.mxu0 0.0
      %274 = vmatpush2.msra.mxu0 0.0
      %275 = vmatprep.subr.mxu0 0.0
      %276 = vmatpush2.msra.mxu0 0.0
      %277 = vmatprep.subr.mxu0 0.0
      %278 = vmatpush2.msra.mxu0 0.0
      %279 = vmatprep.subr.mxu0 0.0
      %280 = vmatpush2.msra.mxu0 0.0
      %281 = vmatprep.subr.mxu0 0.0
      %282 = vmatpush2.msra.mxu0 0.0
      %283 = vmatprep.subr.mxu0 0.0
      %284 = vmatpush2.msra.mxu0 0.0
      %285 = vmatprep.subr.mxu0 0.0
      %286 = vmatpush2.msra.mxu0 0.0
      %287 = vmatprep.mubr.f32.mxu0 0.0
      %288 = vmatmul.mubr.f32.gmra.mxu0 %v221
      %v289 = vpop.f32.mrf.mxu0
      %v290 = vadd.f32 0.0, %v289
      %v291 = vpop.f32.mrf.mxu0
      %292 = vdwg.mxu0
      %v294 = vsel %vm219, %v201, 0
      %296 = vmatprep.subr.mxu0 0.0
      %297 = vmatpush1.msra.mxu0 0.0
      %298 = vmatprep.subr.mxu0 0.0
      %299 = vmatpush1.msra.mxu0 0.0
      %300 = vmatprep.subr.mxu0 0.0
      %301 = vmatpush1.msra.mxu0 0.0
      %302 = vmatprep.subr.mxu0 0.0
      %303 = vmatpush1.msra.mxu0 0.0
      %304 = vmatprep.subr.mxu0 0.0
      %305 = vmatpush1.msra.mxu0 0.0
      %306 = vmatprep.subr.mxu0 0.0
      %307 = vmatpush1.msra.mxu0 0.0
      %308 = vmatprep.subr.mxu0 0.0
      %309 = vmatpush1.msra.mxu0 0.0
      %310 = vmatprep.subr.mxu0 0.0
      %311 = vmatpush1.msra.mxu0 0.0
      %312 = vmatprep.subr.mxu0 0.0
      %313 = vmatpush1.msra.mxu0 %v209
      %314 = vmatprep.subr.mxu0 0.0
      %315 = vmatpush1.msra.mxu0 %v208
      %316 = vmatprep.subr.mxu0 0.0
      %317 = vmatpush1.msra.mxu0 %v207
      %318 = vmatprep.subr.mxu0 0.0
      %319 = vmatpush1.msra.mxu0 %v206
      %320 = vmatprep.subr.mxu0 0.0
      %321 = vmatpush1.msra.mxu0 %v205
      %322 = vmatprep.subr.mxu0 0.0
      %323 = vmatpush1.msra.mxu0 %v204
      %324 = vmatprep.subr.mxu0 0.0
      %325 = vmatpush1.msra.mxu0 %v203
      %326 = vmatprep.subr.mxu0 0.0
      %327 = vmatpush1.msra.mxu0 %v202
      %328 = vmatprep.subr.mxu0 0.0
      %329 = vmatpush2.msra.mxu0 0.0
      %330 = vmatprep.subr.mxu0 0.0
      %331 = vmatpush2.msra.mxu0 0.0
      %332 = vmatprep.subr.mxu0 0.0
      %333 = vmatpush2.msra.mxu0 0.0
      %334 = vmatprep.subr.mxu0 0.0
      %335 = vmatpush2.msra.mxu0 0.0
      %336 = vmatprep.subr.mxu0 0.0
      %337 = vmatpush2.msra.mxu0 0.0
      %338 = vmatprep.subr.mxu0 0.0
      %339 = vmatpush2.msra.mxu0 0.0
      %340 = vmatprep.subr.mxu0 0.0
      %341 = vmatpush2.msra.mxu0 0.0
      %342 = vmatprep.subr.mxu0 0.0
      %343 = vmatpush2.msra.mxu0 0.0
      %344 = vmatprep.subr.mxu0 0.0
      %345 = vmatpush2.msra.mxu0 0.0
      %346 = vmatprep.subr.mxu0 0.0
      %347 = vmatpush2.msra.mxu0 0.0
      %348 = vmatprep.subr.mxu0 0.0
      %349 = vmatpush2.msra.mxu0 0.0
      %350 = vmatprep.subr.mxu0 0.0
      %351 = vmatpush2.msra.mxu0 0.0
      %352 = vmatprep.subr.mxu0 0.0
      %353 = vmatpush2.msra.mxu0 0.0
      %354 = vmatprep.subr.mxu0 0.0
      %355 = vmatpush2.msra.mxu0 0.0
      %356 = vmatprep.subr.mxu0 0.0
      %357 = vmatpush2.msra.mxu0 0.0
      %358 = vmatprep.subr.mxu0 0.0
      %359 = vmatpush2.msra.mxu0 0.0
      %360 = vmatprep.mubr.f32.mxu0 0.0
      %361 = vmatmul.mubr.f32.gmra.mxu0 %v294
      %v362 = vpop.f32.mrf.mxu0
      %v363 = vadd.f32 %v290, %v362
      %v364 = vpop.f32.mrf.mxu0
      %365 = vdwg.mxu0
      %v366 = vld [vmem:[#allocation2 + $0x1] sm:$0x1]
      %367 = vst.msk [vmem:[#allocation2] sm:$0x1] %vm199, %v366
      %v368 = vld [vmem:[%s2] sm:$0x1]
      %v369 = vadd.f32 %v363, %v368
      %370 = vst [vmem:[%s191] sm:$0x1] %v369
      %p371 = scmp.lt.s32.totalorder %s18, 1
      %s372 = scalar_select %p371, %s18, 1
      %p373 = scmp.lt.s32.totalorder %s19, 0
      %s374 = scalar_select %p373, %s19, 0
      %s375 = sadd.s32 %s374, %s372
      %s376 = scalar_lea.vmem %s3, %s375
      // Predicated region
      $region37: #{causal_conv1d.1} parent=31 // pred_check
        %p377 = pneg %p116
      $region38: #{causal_conv1d.1} parent=31 // pred_check_branch
        %379 = sbr.rel (%p377) target = $region40
      $region39: #{causal_conv1d.1} parent=31 // pred_region
        _
      $region40: #{causal_conv1d.1} parent=31 // pred_fallthru
        _
    $region32: #{causal_conv1d.1} parent=5 // pred_fallthru
      _
    %p380 = scmp.le.s32.totalorder 2, %s9
    // Predicated region
    $region41: #{causal_conv1d.1} parent=5 // pred_check
      %p381 = pneg %p380
    $region42: #{causal_conv1d.1} parent=5 // pred_check_branch
      %383 = sbr.rel (%p381) target = $region44
    $region43: #{causal_conv1d.1} parent=5 // pred_region
      %s384 = ssub.s32 %s9, 2
      // Predicated region
      $region45: #{causal_conv1d.1} parent=43 // pred_check
        %p385 = pneg %p122
      $region46: #{causal_conv1d.1} parent=43 // pred_check_branch
        %387 = sbr.rel (%p385) target = $region48
      $region47: #{causal_conv1d.1} parent=43 // pred_region
        %p388 = scmp.lt.s32.totalorder %s20, 1
        %s389 = scalar_select %p388, %s20, 1
        %p390 = scmp.lt.s32.totalorder %s21, 0
        %s391 = scalar_select %p390, %s21, 0
        %s392 = sadd.s32 %s391, %s389
        %s393 = scalar_lea.vmem %s3, %s392
      $region48: #{causal_conv1d.1} parent=43 // pred_fallthru
        _
    $region44: #{causal_conv1d.1} parent=5 // pred_fallthru
      _
  $region6: #{causal_conv1d.1} parent=0 // loop_footer
    %s13 = sadd.s32 1, %s9
  $region7: #{causal_conv1d.1} parent=0 // loop_footer_branch
    %8 = sbr.rel target = $region3
  $region8: #{causal_conv1d.1} parent=0 // loop_exit
    _

</llo_original>
